<compile_context>
chip_gen: v5e
topology: v5e:2x2
jax: 0.10.0
libtpu: 0.0.40
codegen_flags: <defaults>
</compile_context>

<pallas_src>
import functools

import jax
import jax.numpy as jnp
from jax.experimental import pallas as pl
from jax.experimental.pallas import tpu as pltpu

NUM_EXPERTS = 4   # merge() in the reference module unpacks exactly 4 results
LANE = 128


def _round_up(x, m):
    return (x + m - 1) // m * m


def _pick_row_tile(b):
    """Row tile: >=2 grid steps for medium B (v7x megacore), 512 cap for big B."""
    if b <= 8:
        return 8
    if b <= 1024:
        return _round_up(pl.cdiv(b, 2), 8)
    return 512


def _fused_moe_kernel(x_ref, w_ref, b_ref, gw_ref, gb_ref, out_ref,
                      *, e, h, eh, hp):
    """Fused 4-expert forward + softmax-gate merge.

    x_ref  : [TB, D]    input rows for this grid step (any float dtype)
    w_ref  : [D, EHP]   bf16 stacked expert weights (lanes [0, E*H), zero pad)
    b_ref  : [1, EHP]   f32 stacked expert biases
    gw_ref : [D, E]     bf16 gate weight
    gb_ref : [1, E]     f32 gate bias
    out_ref: [TB, HP]   lane-dense padded output (result in lanes [0, H))
    """
    x = x_ref[...].astype(jnp.bfloat16)                                # [TB, D]

    # One lane-dense bf16 MXU matmul for all expert pre-activations (f32 acc).
    y = jnp.dot(x, w_ref[...], preferred_element_type=jnp.float32) + b_ref[...]
    y_exp = jnp.maximum(y[:, :eh], 0.0)                                # [TB, EH]

    # Gate logits: tiny separate dot (no zero-padded gate columns in the slab).
    logits = jnp.dot(x, gw_ref[...],
                     preferred_element_type=jnp.float32) + gb_ref[...]  # [TB, E]
    logits = logits - jnp.max(logits, axis=-1, keepdims=True)
    p = jnp.exp(logits)
    probs = p * pl.reciprocal(jnp.sum(p, axis=-1, keepdims=True), approx=True)

    # Spread probs over each expert's H lanes with an exact 0/1 selector matmul;
    # the selector is built in-kernel from iota compares (no HBM constant).
    sub = jax.lax.broadcasted_iota(jnp.int32, (e, eh), 0)
    lane = jax.lax.broadcasted_iota(jnp.int32, (e, eh), 1)
    sel = jnp.logical_and(lane >= sub * h, lane < (sub + 1) * h)
    p_wide = jnp.dot(probs, sel.astype(jnp.float32),
                     preferred_element_type=jnp.float32)               # [TB, EH]

    gated = p_wide * y_exp                                             # [TB, EH]

    if h % LANE == 0:
        # Lane-aligned expert slices: reduce over experts with free-ish VPU adds.
        merged = gated[:, :h]
        for i in range(1, e):
            merged = merged + gated[:, i * h:(i + 1) * h]              # [TB, H==HP]
    else:
        # Sub-128 H: sum over experts AND land the result in the first H lanes
        # of a 128-wide slab via an exact 0/1 reducer matmul (built from iota).
        c_idx = jax.lax.broadcasted_iota(jnp.int32, (eh, hp), 0)
        o_idx = jax.lax.broadcasted_iota(jnp.int32, (eh, hp), 1)
        red = (c_idx == o_idx)
        for i in range(1, e):
            red = jnp.logical_or(red, c_idx == o_idx + i * h)
        red = jnp.logical_and(red, o_idx < h).astype(jnp.float32)
        merged = jnp.dot(gated, red, preferred_element_type=jnp.float32)  # [TB, HP]

    out_ref[...] = merged.astype(out_ref.dtype)


def prepare_expert_params(expert_w, expert_b, gate_w, gate_b):
    """One-time (weight-load time) layout prep; NOT in the per-call path."""
    E, D, H = expert_w.shape
    assert E == NUM_EXPERTS
    EH = E * H
    EHP = _round_up(EH, LANE)
    HP = _round_up(H, LANE)

    # Stack experts along lanes: w_fused[:, e*H + h] = expert_w[e, :, h]  (bf16)
    w_fused = jnp.zeros((D, EHP), jnp.bfloat16)
    w_fused = w_fused.at[:, :EH].set(
        jnp.transpose(expert_w, (1, 0, 2)).reshape(D, EH).astype(jnp.bfloat16))
    # Biases stay f32 (added to the f32 accumulator; negligible bytes).
    b_fused = jnp.zeros((1, EHP), jnp.float32)
    b_fused = b_fused.at[:, :EH].set(expert_b.reshape(1, EH).astype(jnp.float32))

    gw = gate_w.astype(jnp.bfloat16)                          # [D, E]
    gb = gate_b.reshape(1, E).astype(jnp.float32)             # [1, E]

    dims = {'e': E, 'h': H, 'eh': EH, 'ehp': EHP, 'hp': HP, 'd': D}
    return (w_fused, b_fused, gw, gb), dims


def multi_expert_forward(x, params, dims):
    """gate_method(expert_0(x), ..., expert_3(x)) as a single Pallas kernel."""
    w_fused, b_fused, gw, gb = params
    B, D = x.shape
    assert D == dims['d']
    E, H, EHP, HP = dims['e'], dims['h'], dims['ehp'], dims['hp']

    TB = _pick_row_tile(B)
    grid = (pl.cdiv(B, TB),)   # Pallas handles the ragged last row block.

    kernel = functools.partial(_fused_moe_kernel,
                               e=E, h=H, eh=dims['eh'], hp=HP)
    out = pl.pallas_call(
        kernel,
        out_shape=jax.ShapeDtypeStruct((B, HP), jnp.float32),
        grid=grid,
        in_specs=[
            pl.BlockSpec((TB, D), lambda i: (i, 0)),      # x rows for this step
            pl.BlockSpec((D, EHP), lambda i: (0, 0)),     # fused expert weights
            pl.BlockSpec((1, EHP), lambda i: (0, 0)),     # fused expert biases
            pl.BlockSpec((D, E), lambda i: (0, 0)),       # gate weight
            pl.BlockSpec((1, E), lambda i: (0, 0)),       # gate bias
        ],
        out_specs=pl.BlockSpec((TB, HP), lambda i: (i, 0)),
        compiler_params=pltpu.CompilerParams(
            dimension_semantics=("parallel",)),           # v7x: shard rows on 2 TCs
    )(x, w_fused, b_fused, gw, gb)

    # Pure layout plumbing: drop lane padding (no-op when H % 128 == 0).
    return out[:, :H] if HP != H else out


def reference_forward(x, expert_w, expert_b, gate_w, gate_b):
    """Pure-JAX reference (matched bf16 MXU-input precision, f32 math)."""
    xb = x.astype(jnp.bfloat16).astype(jnp.float32)
    ew = expert_w.astype(jnp.bfloat16).astype(jnp.float32)
    gw = gate_w.astype(jnp.bfloat16).astype(jnp.float32)
    logits = xb @ gw + gate_b.reshape(1, -1)
    probs = jax.nn.softmax(logits, axis=-1)                            # [B, E]
    ys = jnp.stack([jnp.maximum(xb @ ew[e] + expert_b[e], 0.0)
                    for e in range(NUM_EXPERTS)], axis=0)              # [E, B, H]
    return jnp.einsum('be,ebh->bh', probs, ys)


# TODO(synk): GPU memory monitoring (pynvml / GPUMonitor thread), thread-pool
# task scheduling, dynamic batch-size search and wall-clock timing in the
# original module are host-side infrastructure with no Pallas equivalent and
# are not modeled.

if __name__ == "__main__":
    B, D, H = 8, 32, 32
    key = jax.random.PRNGKey(0)
    k_x, k_w, k_b, k_gw, k_gb = jax.random.split(key, 5)

    x = jax.random.normal(k_x, (B, D), dtype=jnp.float32)
    expert_w = jax.random.normal(k_w, (NUM_EXPERTS, D, H), dtype=jnp.float32) * 0.1
    expert_b = jax.random.normal(k_b, (NUM_EXPERTS, H), dtype=jnp.float32) * 0.01
    gate_w = jax.random.normal(k_gw, (D, NUM_EXPERTS), dtype=jnp.float32) * 0.1
    gate_b = jnp.zeros((NUM_EXPERTS,), dtype=jnp.float32)

    # One-time weight-layout prep (hoisted out of the per-call path).
    params, dims = prepare_expert_params(expert_w, expert_b, gate_w, gate_b)

    out = multi_expert_forward(x, params, dims)
    out = jax.block_until_ready(out)

    ref = reference_forward(x, expert_w, expert_b, gate_w, gate_b)
    assert out.shape == (B, H)
    assert jnp.allclose(out, ref, atol=2e-3, rtol=2e-3), "mismatch vs reference"

    print("KERNEL_OK")
</pallas_src>

<mosaic_0001>
module attributes {stable_mosaic.version = 11 : i64} {
  func.func @_fused_moe_kernel(%arg0: i32, %arg1: memref<8x32xf32, #tpu.memory_space<vmem>>, %arg2: memref<32x128xbf16, #tpu.memory_space<vmem>>, %arg3: memref<1x128xf32, #tpu.memory_space<vmem>>, %arg4: memref<32x4xbf16, #tpu.memory_space<vmem>>, %arg5: memref<1x4xf32, #tpu.memory_space<vmem>>, %arg6: memref<8x128xf32, #tpu.memory_space<vmem>>) attributes {dimension_semantics = [#tpu.dimension_semantics<parallel>], iteration_bounds = array<i64: 1>, scalar_prefetch = 0 : i64, scratch_operands = 0 : i64, tpu.core_type = #tpu.core_type<tc>, window_params = [{transform_indices = @transform_0, window_bounds = array<i64: 8, 32>}, {pipeline_mode = #tpu.pipeline_mode<synchronous>, transform_indices = @transform_1, window_bounds = array<i64: 32, 128>}, {pipeline_mode = #tpu.pipeline_mode<synchronous>, transform_indices = @transform_2, window_bounds = array<i64: 1, 128>}, {pipeline_mode = #tpu.pipeline_mode<synchronous>, transform_indices = @transform_3, window_bounds = array<i64: 32, 4>}, {pipeline_mode = #tpu.pipeline_mode<synchronous>, transform_indices = @transform_4, window_bounds = array<i64: 1, 4>}, {transform_indices = @transform_5, window_bounds = array<i64: 8, 128>}]} {
    %c0 = arith.constant 0 : index
    %c0_0 = arith.constant 0 : index
    %0 = vector.load %arg1[%c0, %c0_0] : memref<8x32xf32, #tpu.memory_space<vmem>>, vector<8x32xf32>
    %1 = arith.truncf %0 : vector<8x32xf32> to vector<8x32xbf16>
    %c0_1 = arith.constant 0 : index
    %c0_2 = arith.constant 0 : index
    %2 = vector.load %arg2[%c0_1, %c0_2] : memref<32x128xbf16, #tpu.memory_space<vmem>>, vector<32x128xbf16>
    %cst = arith.constant dense<0.000000e+00> : vector<8x128xf32>
    %3 = tpu.matmul %1, %2, %cst {dimension_numbers = #tpu.dot_dimension_numbers<[1], [0], [0], [1], [0, 0, 1, 1], [], []>} : vector<8x32xbf16>, vector<32x128xbf16>, vector<8x128xf32> -> vector<8x128xf32>
    %c0_3 = arith.constant 0 : index
    %c0_4 = arith.constant 0 : index
    %4 = vector.load %arg3[%c0_3, %c0_4] : memref<1x128xf32, #tpu.memory_space<vmem>>, vector<1x128xf32>
    %5 = vector.broadcast %4 : vector<1x128xf32> to vector<8x128xf32>
    %6 = arith.addf %3, %5 : vector<8x128xf32>
    %cst_5 = arith.constant 0.000000e+00 : f32
    %7 = vector.broadcast %cst_5 : f32 to vector<8x128xf32>
    %8 = arith.maximumf %6, %7 : vector<8x128xf32>
    %c0_6 = arith.constant 0 : index
    %c0_7 = arith.constant 0 : index
    %9 = vector.load %arg4[%c0_6, %c0_7] : memref<32x4xbf16, #tpu.memory_space<vmem>>, vector<32x4xbf16>
    %cst_8 = arith.constant dense<0.000000e+00> : vector<8x4xf32>
    %10 = tpu.matmul %1, %9, %cst_8 {dimension_numbers = #tpu.dot_dimension_numbers<[1], [0], [0], [1], [0, 0, 1, 1], [], []>} : vector<8x32xbf16>, vector<32x4xbf16>, vector<8x4xf32> -> vector<8x4xf32>
    %c0_9 = arith.constant 0 : index
    %c0_10 = arith.constant 0 : index
    %11 = vector.load %arg5[%c0_9, %c0_10] : memref<1x4xf32, #tpu.memory_space<vmem>>, vector<1x4xf32>
    %12 = vector.broadcast %11 : vector<1x4xf32> to vector<8x4xf32>
    %13 = arith.addf %10, %12 : vector<8x4xf32>
    %cst_11 = arith.constant dense<0xFF800000> : vector<8xf32>
    %14 = vector.multi_reduction <maximumf>, %13, %cst_11 [1] : vector<8x4xf32> to vector<8xf32>
    %15 = vector.shape_cast %14 : vector<8xf32> to vector<8x1xf32>
    %16 = vector.broadcast %15 : vector<8x1xf32> to vector<8x4xf32>
    %17 = arith.subf %13, %16 : vector<8x4xf32>
    %18 = math.exp %17 : vector<8x4xf32>
    %cst_12 = arith.constant dense<0.000000e+00> : vector<8xf32>
    %19 = vector.multi_reduction <add>, %18, %cst_12 [1] : vector<8x4xf32> to vector<8xf32>
    %20 = vector.shape_cast %19 : vector<8xf32> to vector<8x1xf32>
    %21 = tpu.reciprocal %20 {approx = true} : vector<8x1xf32> -> vector<8x1xf32>
    %22 = vector.broadcast %21 : vector<8x1xf32> to vector<8x4xf32>
    %23 = arith.mulf %18, %22 : vector<8x4xf32>
    %24 = tpu.iota {dimensions = array<i32: 0>} : vector<4x128xi32>
    %25 = tpu.iota {dimensions = array<i32: 1>} : vector<4x128xi32>
    %c32_i32 = arith.constant 32 : i32
    %26 = vector.broadcast %c32_i32 : i32 to vector<4x128xi32>
    %27 = arith.muli %24, %26 : vector<4x128xi32>
    %28 = arith.cmpi sge, %25, %27 : vector<4x128xi32>
    %c1_i32 = arith.constant 1 : i32
    %29 = vector.broadcast %c1_i32 : i32 to vector<4x128xi32>
    %30 = arith.addi %24, %29 : vector<4x128xi32>
    %c32_i32_13 = arith.constant 32 : i32
    %31 = vector.broadcast %c32_i32_13 : i32 to vector<4x128xi32>
    %32 = arith.muli %30, %31 : vector<4x128xi32>
    %33 = arith.cmpi slt, %25, %32 : vector<4x128xi32>
    %34 = arith.andi %28, %33 : vector<4x128xi1>
    %35 = arith.extui %34 : vector<4x128xi1> to vector<4x128xi32>
    %36 = arith.sitofp %35 : vector<4x128xi32> to vector<4x128xf32>
    %cst_14 = arith.constant dense<0.000000e+00> : vector<8x128xf32>
    %37 = tpu.matmul %23, %36, %cst_14 {dimension_numbers = #tpu.dot_dimension_numbers<[1], [0], [0], [1], [0, 0, 1, 1], [], []>} : vector<8x4xf32>, vector<4x128xf32>, vector<8x128xf32> -> vector<8x128xf32>
    %38 = arith.mulf %37, %8 : vector<8x128xf32>
    %39 = tpu.iota {dimensions = array<i32: 0>} : vector<128x128xi32>
    %40 = tpu.iota {dimensions = array<i32: 1>} : vector<128x128xi32>
    %41 = arith.cmpi eq, %39, %40 : vector<128x128xi32>
    %c32_i32_15 = arith.constant 32 : i32
    %42 = vector.broadcast %c32_i32_15 : i32 to vector<128x128xi32>
    %43 = arith.addi %40, %42 : vector<128x128xi32>
    %44 = arith.cmpi eq, %39, %43 : vector<128x128xi32>
    %45 = arith.ori %41, %44 : vector<128x128xi1>
    %c64_i32 = arith.constant 64 : i32
    %46 = vector.broadcast %c64_i32 : i32 to vector<128x128xi32>
    %47 = arith.addi %40, %46 : vector<128x128xi32>
    %48 = arith.cmpi eq, %39, %47 : vector<128x128xi32>
    %49 = arith.ori %45, %48 : vector<128x128xi1>
    %c96_i32 = arith.constant 96 : i32
    %50 = vector.broadcast %c96_i32 : i32 to vector<128x128xi32>
    %51 = arith.addi %40, %50 : vector<128x128xi32>
    %52 = arith.cmpi eq, %39, %51 : vector<128x128xi32>
    %53 = arith.ori %49, %52 : vector<128x128xi1>
    %c32_i32_16 = arith.constant 32 : i32
    %54 = vector.broadcast %c32_i32_16 : i32 to vector<128x128xi32>
    %55 = arith.cmpi slt, %40, %54 : vector<128x128xi32>
    %56 = arith.andi %53, %55 : vector<128x128xi1>
    %57 = arith.extui %56 : vector<128x128xi1> to vector<128x128xi32>
    %58 = arith.sitofp %57 : vector<128x128xi32> to vector<128x128xf32>
    %cst_17 = arith.constant dense<0.000000e+00> : vector<8x128xf32>
    %59 = tpu.matmul %38, %58, %cst_17 {dimension_numbers = #tpu.dot_dimension_numbers<[1], [0], [0], [1], [0, 0, 1, 1], [], []>} : vector<8x128xf32>, vector<128x128xf32>, vector<8x128xf32> -> vector<8x128xf32>
    %c0_18 = arith.constant 0 : index
    %c0_19 = arith.constant 0 : index
    %60 = vector.load %arg6[%c0_18, %c0_19] : memref<8x128xf32, #tpu.memory_space<vmem>>, vector<8x128xf32>
    tpu.vector_store %arg6[%c0_18, %c0_19], %59 {strides = array<i32>} : memref<8x128xf32, #tpu.memory_space<vmem>>, vector<8x128xf32>,
    return
  }
  func.func @transform_0(%arg0: i32) -> (i32, i32) {
    %c0_i32 = arith.constant 0 : i32
    %c0_i32_0 = arith.constant 0 : i32
    return %arg0, %c0_i32 : i32, i32
  }
  func.func @transform_1(%arg0: i32) -> (i32, i32) {
    %c0_i32 = arith.constant 0 : i32
    %c0_i32_0 = arith.constant 0 : i32
    %c0_i32_1 = arith.constant 0 : i32
    return %c0_i32, %c0_i32_0 : i32, i32
  }
  func.func @transform_2(%arg0: i32) -> (i32, i32) {
    %c0_i32 = arith.constant 0 : i32
    %c0_i32_0 = arith.constant 0 : i32
    %c0_i32_1 = arith.constant 0 : i32
    return %c0_i32, %c0_i32_0 : i32, i32
  }
  func.func @transform_3(%arg0: i32) -> (i32, i32) {
    %c0_i32 = arith.constant 0 : i32
    %c0_i32_0 = arith.constant 0 : i32
    %c0_i32_1 = arith.constant 0 : i32
    return %c0_i32, %c0_i32_0 : i32, i32
  }
  func.func @transform_4(%arg0: i32) -> (i32, i32) {
    %c0_i32 = arith.constant 0 : i32
    %c0_i32_0 = arith.constant 0 : i32
    %c0_i32_1 = arith.constant 0 : i32
    return %c0_i32, %c0_i32_0 : i32, i32
  }
  func.func @transform_5(%arg0: i32) -> (i32, i32) {
    %c0_i32 = arith.constant 0 : i32
    %c0_i32_0 = arith.constant 0 : i32
    return %arg0, %c0_i32 : i32, i32
  }
}

</mosaic_0001>

<llo_original>
// kernel: tpu_custom_call.1
$region0: #{tpu_custom_call.1}
  #allocation0 [shape = 'u32[]', space=smem, size = 0x4, offset = 0x4, fixed_abs, tag = 'smem constant byte address 0x4 - core index']
  #allocation1 [shape = 'u32[72,128]{1,0:T(1,128)}', space=vmem, size = 0x9000, scoped, tag = 'internal scratch']
  %s0 = inlined_call_operand.hbm [shape: f32[8,32], index: 0, kind: input, shape index: {}]
  %s1 = inlined_call_operand.vmem [shape: bf16[32,128], index: 1, kind: input, shape index: {}]
  %s2 = inlined_call_operand.vmem [shape: f32[1,128], index: 2, kind: input, shape index: {}]
  %s3 = inlined_call_operand.vmem [shape: bf16[32,4], index: 3, kind: input, shape index: {}]
  %s4 = inlined_call_operand.vmem [shape: f32[1,4], index: 4, kind: input, shape index: {}]
  %s5 = inlined_call_operand.hbm [shape: f32[8,128], index: 5, kind: output, shape index: {}]
  %s6 = sld [smem:[#allocation0]]
  $region34: #{tpu_custom_call.1} parent=0
    _
  %s8 = ssub.s32 1, %s6
  %s9 = scalar_select 0, %s8, %s6
  $region1: #{tpu_custom_call.1} parent=0
    #allocation2 [shape = 'u8[4096]{0}', space=vmem, size = 0x1000, scoped, tag = 'input window, operand 0, single buffered']
    #allocation3 [shape = 's32[1]{0}', space=sflag, size = 0x4, scoped, tag = 'scoped memory for tpu_custom_call.1']
    #allocation4 [shape = 's32[1]{0}', space=sflag, size = 0x4, scoped, tag = 'scoped memory for tpu_custom_call.1']
    #allocation5 [shape = 'u8[4096]{0}', space=vmem, size = 0x1000, scoped, tag = 'output window, operand 0, single buffered']
    %10 = vsyncpa [#allocation3], 0
    %11 = vsyncpa [#allocation4], 0
    // Predicated region
    $region2: #{tpu_custom_call.1} parent=1 // pred_check
      _
    $region3: #{tpu_custom_call.1} parent=1 // pred_check_branch
      %13 = sbr.rel (0) target = $region5
    $region4: #{tpu_custom_call.1} parent=1 // pred_region
      %15 = vsyncadd [#allocation3], 0
      %s17 = sshll.u32 %s0, 4
      %s18 = int_to_ptr.hbm [resolvable:$true] %s17
      %s19 = sshll.u32 [#allocation2], 4
      %s20 = int_to_ptr.vmem [resolvable:$true] %s19
      %22 = dma.hbm_to_vmem [thread:$0]  %s18, 128, %s20, [#allocation3]
    $region5: #{tpu_custom_call.1} parent=1 // pred_fallthru
      _
    // Predicated region
    $region6: #{tpu_custom_call.1} parent=1 // pred_check
      _
    $region7: #{tpu_custom_call.1} parent=1 // pred_check_branch
      %24 = sbr.rel (0) target = $region9
    $region8: #{tpu_custom_call.1} parent=1 // pred_region
      _
    $region9: #{tpu_custom_call.1} parent=1 // pred_fallthru
      _
    // Predicated region
    $region10: #{tpu_custom_call.1} parent=1 // pred_check
      _
    $region11: #{tpu_custom_call.1} parent=1 // pred_check_branch
      %26 = sbr.rel (0) target = $region13
    $region12: #{tpu_custom_call.1} parent=1 // pred_region
      _
    $region13: #{tpu_custom_call.1} parent=1 // pred_fallthru
      _
    // Predicated region
    $region14: #{tpu_custom_call.1} parent=1 // pred_check
      _
    $region15: #{tpu_custom_call.1} parent=1 // pred_check_branch
      %28 = sbr.rel (0) target = $region17
    $region16: #{tpu_custom_call.1} parent=1 // pred_region
      _
    $region17: #{tpu_custom_call.1} parent=1 // pred_fallthru
      _
    // Predicated region
    $region18: #{tpu_custom_call.1} parent=1 // pred_check
      _
    $region19: #{tpu_custom_call.1} parent=1 // pred_check_branch
      %30 = sbr.rel (0) target = $region21
    $region20: #{tpu_custom_call.1} parent=1 // pred_region
      _
    $region21: #{tpu_custom_call.1} parent=1 // pred_fallthru
      _
    // Predicated region
    $region22: #{tpu_custom_call.1} parent=1 // pred_check
      _
    $region23: #{tpu_custom_call.1} parent=1 // pred_check_branch
      %32 = sbr.rel (0) target = $region25
    $region24: #{tpu_custom_call.1} parent=1 // pred_region
      %34 = dma.done [#allocation3], 128
    $region25: #{tpu_custom_call.1} parent=1 // pred_fallthru
      _
    %v36 = vld [vmem:[#allocation2] sm:$0xff]
    %v37 = vpack.c.bf16 %v36, %v36
    %v38 = vld [vmem:[%s1] sm:$0xf]
    %v39 = vld [vmem:[%s1 + $0x4] sm:$0xf]
    %v40 = vld [vmem:[%s1 + $0x8] sm:$0xf]
    %v41 = vld [vmem:[%s1 + $0xc] sm:$0xf]
    %v42 = vld [vmem:[%s2] sm:$0x1]
    %v44 = vperm.slane %v42, 0
    %v50 = vunpack.c.l.b16 %v38
    %v51 = vunpack.c.l.b16 %v39
    %v52 = vunpack.c.l.b16 %v40
    %v53 = vunpack.c.l.b16 %v41
    %v54 = vpack.c.b16 %v51, %v50
    %v55 = vpack.c.b16 %v53, %v52
    %vm58 = vcmask 261120
    %v60 = vsel %vm58, %v37, 0
    %62 = vmatpush.bf16.msra.mxu0 0
    %63 = vmatpush.bf16.msra.mxu0 0
    %64 = vmatpush.bf16.msra.mxu0 0
    %65 = vmatpush.bf16.msra.mxu0 0
    %66 = vmatpush.bf16.msra.mxu0 0
    %67 = vmatpush.bf16.msra.mxu0 0
    %68 = vmatpush.bf16.msra.mxu0 %v55
    %69 = vmatpush.bf16.msra.mxu0 %v54
    %70 = vmatmul.bf16.gmra.mxu0 %v60
    %v71 = vpop.f32.mrf.mxu0
    %v72 = vadd.f32 %v44, %v71
    %v73 = vpop.f32.mrf.mxu0
    %74 = vdwg.mxu0
    %v75 = vmax.f32 %v72, 0.0
    %v76 = vld [vmem:[%s3] sm:$0xf]
    %v77 = vld [vmem:[%s3 + $0x4] sm:$0xf]
    %v78 = vld [vmem:[%s3 + $0x8] sm:$0xf]
    %v79 = vld [vmem:[%s3 + $0xc] sm:$0xf]
    %v80 = vld [vmem:[%s4] sm:$0x1]
    %v82 = vperm.slane %v80, 0
    %v88 = vunpack.c.l.b16 %v76
    %v89 = vunpack.c.l.b16 %v77
    %v90 = vunpack.c.l.b16 %v78
    %v91 = vunpack.c.l.b16 %v79
    %v92 = vpack.c.b16 %v89, %v88
    %v93 = vpack.c.b16 %v91, %v90
    %96 = vmatpush.bf16.msra.mxu0 0
    %97 = vmatpush.bf16.msra.mxu0 0
    %98 = vmatpush.bf16.msra.mxu0 0
    %99 = vmatpush.bf16.msra.mxu0 0
    %100 = vmatpush.bf16.msra.mxu0 0
    %101 = vmatpush.bf16.msra.mxu0 0
    %102 = vmatpush.bf16.msra.mxu0 %v93
    %103 = vmatpush.bf16.msra.mxu0 %v92
    %104 = vmatmul.bf16.gmra.mxu0 %v60
    %v105 = vpop.f32.mrf.mxu0
    %v106 = vadd.f32 %v82, %v105
    %v107 = vpop.f32.mrf.mxu0
    %108 = vdwg.mxu0
    %vm109 = vcmask 31744
    %v110 = vsel %vm109, %v106, -inf
    %111 = vmax.xlane.f32.xlu0 %v110
    %v112 = vpop.xlane.xlu0 %111
    %v113 = vsub.f32 %v106, %v112
    %v114 = vmul.f32 %v113, 1.442695
    %v115 = vpow.pop %v114
    %v116 = vsel %vm109, %v115, 0.0
    %117 = vadd.xlane.f32.xlu0 %v116
    %v118 = vpop.xlane.xlu0 %117
    %v119 = vrcp.pop %v118
    %v120 = vmul.f32 %v115, %v119
    %v121 = vlaneseq
    %v122 = vshrl.u32 %v121, 7
    %v123 = vlaneseq
    %v124 = vand.u32 %v123, 127
    %v125 = vmul.u32 %v122, 32
    %vm126 = vcmp.ge.s32.totalorder %v124, %v125
    %v127 = vadd.s32 %v122, 1
    %v128 = vmul.u32 %v127, 32
    %vm129 = vcmp.lt.s32.totalorder %v124, %v128
    %vm130 = vmand %vm126, %vm129
    %v131 = vsel %vm130, 1, 0
    %v132 = vcvt.s32.f32 %v131
    %v134 = vsel %vm109, %v120, 0
    %vm136 = vcmask 1043456
    %v138 = vsel %vm136, %v132, 0
    %140 = vmatpush.msra.mxu0 0.0
    %141 = vmatpush.msra.mxu0 0.0
    %142 = vmatpush.msra.mxu0 0.0
    %143 = vmatpush.msra.mxu0 0.0
    %144 = vmatpush.msra.mxu0 0.0
    %145 = vmatpush.msra.mxu0 0.0
    %146 = vmatpush.msra.mxu0 0.0
    %147 = vmatpush.msra.mxu0 0.0
    %148 = vmatpush.msra.mxu0 0.0
    %149 = vmatpush.msra.mxu0 0.0
    %150 = vmatpush.msra.mxu0 0.0
    %151 = vmatpush.msra.mxu0 0.0
    %152 = vmatpush.msra.mxu0 0.0
    %153 = vmatpush.msra.mxu0 0.0
    %154 = vmatpush.msra.mxu0 0.0
    %155 = vmatpush.msra.mxu0 %v138
    %156 = vmatmul.f32.gmra.mxu0 %v134
    %v157 = vpop.f32.mrf.mxu0
    %v158 = vadd.f32 0.0, %v157
    %159 = vdwg.mxu0
    %v160 = vmul.f32 %v158, %v75
    %v161 = vadd.s32 %v122, 8
    %v162 = vadd.s32 %v122, 16
    %v163 = vadd.s32 %v122, 24
    %v164 = vadd.s32 %v122, 32
    %v165 = vadd.s32 %v122, 40
    %v166 = vadd.s32 %v122, 48
    %v167 = vadd.s32 %v122, 56
    %v168 = vadd.s32 %v122, 64
    %v169 = vadd.s32 %v122, 72
    %v170 = vadd.s32 %v122, 80
    %v171 = vadd.s32 %v122, 88
    %v172 = vadd.s32 %v122, 96
    %v173 = vadd.s32 %v122, 104
    %v174 = vadd.s32 %v122, 112
    %v175 = vadd.s32 %v122, 120
    %vm176 = vcmp.eq.s32.totalorder %v122, %v124
    %vm177 = vcmp.eq.s32.totalorder %v161, %v124
    %vm178 = vcmp.eq.s32.totalorder %v162, %v124
    %vm179 = vcmp.eq.s32.totalorder %v163, %v124
    %vm180 = vcmp.eq.s32.totalorder %v164, %v124
    %vm181 = vcmp.eq.s32.totalorder %v165, %v124
    %vm182 = vcmp.eq.s32.totalorder %v166, %v124
    %vm183 = vcmp.eq.s32.totalorder %v167, %v124
    %vm184 = vcmp.eq.s32.totalorder %v168, %v124
    %vm185 = vcmp.eq.s32.totalorder %v169, %v124
    %vm186 = vcmp.eq.s32.totalorder %v170, %v124
    %vm187 = vcmp.eq.s32.totalorder %v171, %v124
    %vm188 = vcmp.eq.s32.totalorder %v172, %v124
    %vm189 = vcmp.eq.s32.totalorder %v173, %v124
    %vm190 = vcmp.eq.s32.totalorder %v174, %v124
    %vm191 = vcmp.eq.s32.totalorder %v175, %v124
    %v192 = vadd.s32 %v124, 32
    %vm193 = vcmp.eq.s32.totalorder %v122, %v192
    %vm194 = vcmp.eq.s32.totalorder %v161, %v192
    %vm195 = vcmp.eq.s32.totalorder %v162, %v192
    %vm196 = vcmp.eq.s32.totalorder %v163, %v192
    %vm197 = vcmp.eq.s32.totalorder %v164, %v192
    %vm198 = vcmp.eq.s32.totalorder %v165, %v192
    %vm199 = vcmp.eq.s32.totalorder %v166, %v192
    %vm200 = vcmp.eq.s32.totalorder %v167, %v192
    %vm201 = vcmp.eq.s32.totalorder %v168, %v192
    %vm202 = vcmp.eq.s32.totalorder %v169, %v192
    %vm203 = vcmp.eq.s32.totalorder %v170, %v192
    %vm204 = vcmp.eq.s32.totalorder %v171, %v192
    %vm205 = vcmp.eq.s32.totalorder %v172, %v192
    %vm206 = vcmp.eq.s32.totalorder %v173, %v192
    %vm207 = vcmp.eq.s32.totalorder %v174, %v192
    %vm208 = vcmp.eq.s32.totalorder %v175, %v192
    %vm209 = vmor %vm176, %vm193
    %vm210 = vmor %vm177, %vm194
    %vm211 = vmor %vm178, %vm195
    %vm212 = vmor %vm179, %vm196
    %vm213 = vmor %vm180, %vm197
    %vm214 = vmor %vm181, %vm198
    %vm215 = vmor %vm182, %vm199
    %vm216 = vmor %vm183, %vm200
    %vm217 = vmor %vm184, %vm201
    %vm218 = vmor %vm185, %vm202
    %vm219 = vmor %vm186, %vm203
    %vm220 = vmor %vm187, %vm204
    %vm221 = vmor %vm188, %vm205
    %vm222 = vmor %vm189, %vm206
    %vm223 = vmor %vm190, %vm207
    %vm224 = vmor %vm191, %vm208
    %v225 = vadd.s32 %v124, 64
    %vm226 = vcmp.eq.s32.totalorder %v122, %v225
    %vm227 = vcmp.eq.s32.totalorder %v161, %v225
    %vm228 = vcmp.eq.s32.totalorder %v162, %v225
    %vm229 = vcmp.eq.s32.totalorder %v163, %v225
    %vm230 = vcmp.eq.s32.totalorder %v164, %v225
    %vm231 = vcmp.eq.s32.totalorder %v165, %v225
    %vm232 = vcmp.eq.s32.totalorder %v166, %v225
    %vm233 = vcmp.eq.s32.totalorder %v167, %v225
    %vm234 = vcmp.eq.s32.totalorder %v168, %v225
    %vm235 = vcmp.eq.s32.totalorder %v169, %v225
    %vm236 = vcmp.eq.s32.totalorder %v170, %v225
    %vm237 = vcmp.eq.s32.totalorder %v171, %v225
    %vm238 = vcmp.eq.s32.totalorder %v172, %v225
    %vm239 = vcmp.eq.s32.totalorder %v173, %v225
    %vm240 = vcmp.eq.s32.totalorder %v174, %v225
    %vm241 = vcmp.eq.s32.totalorder %v175, %v225
    %vm242 = vmor %vm209, %vm226
    %vm243 = vmor %vm210, %vm227
    %vm244 = vmor %vm211, %vm228
    %vm245 = vmor %vm212, %vm229
    %vm246 = vmor %vm213, %vm230
    %vm247 = vmor %vm214, %vm231
    %vm248 = vmor %vm215, %vm232
    %vm249 = vmor %vm216, %vm233
    %vm250 = vmor %vm217, %vm234
    %vm251 = vmor %vm218, %vm235
    %vm252 = vmor %vm219, %vm236
    %vm253 = vmor %vm220, %vm237
    %vm254 = vmor %vm221, %vm238
    %vm255 = vmor %vm222, %vm239
    %vm256 = vmor %vm223, %vm240
    %vm257 = vmor %vm224, %vm241
    %v258 = vadd.s32 %v124, 96
    %vm259 = vcmp.eq.s32.totalorder %v122, %v258
    %vm260 = vcmp.eq.s32.totalorder %v161, %v258
    %vm261 = vcmp.eq.s32.totalorder %v162, %v258
    %vm262 = vcmp.eq.s32.totalorder %v163, %v258
    %vm263 = vcmp.eq.s32.totalorder %v164, %v258
    %vm264 = vcmp.eq.s32.totalorder %v165, %v258
    %vm265 = vcmp.eq.s32.totalorder %v166, %v258
    %vm266 = vcmp.eq.s32.totalorder %v167, %v258
    %vm267 = vcmp.eq.s32.totalorder %v168, %v258
    %vm268 = vcmp.eq.s32.totalorder %v169, %v258
    %vm269 = vcmp.eq.s32.totalorder %v170, %v258
    %vm270 = vcmp.eq.s32.totalorder %v171, %v258
    %vm271 = vcmp.eq.s32.totalorder %v172, %v258
    %vm272 = vcmp.eq.s32.totalorder %v173, %v258
    %vm273 = vcmp.eq.s32.totalorder %v174, %v258
    %vm274 = vcmp.eq.s32.totalorder %v175, %v258
    %vm275 = vmor %vm242, %vm259
    %vm276 = vmor %vm243, %vm260
    %vm277 = vmor %vm244, %vm261
    %vm278 = vmor %vm245, %vm262
    %vm279 = vmor %vm246, %vm263
    %vm280 = vmor %vm247, %vm264
    %vm281 = vmor %vm248, %vm265
    %vm282 = vmor %vm249, %vm266
    %vm283 = vmor %vm250, %vm267
    %vm284 = vmor %vm251, %vm268
    %vm285 = vmor %vm252, %vm269
    %vm286 = vmor %vm253, %vm270
    %vm287 = vmor %vm254, %vm271
    %vm288 = vmor %vm255, %vm272
    %vm289 = vmor %vm256, %vm273
    %vm290 = vmor %vm257, %vm274
    %vm291 = vcmp.lt.s32.totalorder %v124, 32
    %vm292 = vmand %vm275, %vm291
    %vm293 = vmand %vm276, %vm291
    %vm294 = vmand %vm277, %vm291
    %vm295 = vmand %vm278, %vm291
    %vm296 = vmand %vm279, %vm291
    %vm297 = vmand %vm280, %vm291
    %vm298 = vmand %vm281, %vm291
    %vm299 = vmand %vm282, %vm291
    %vm300 = vmand %vm283, %vm291
    %vm301 = vmand %vm284, %vm291
    %vm302 = vmand %vm285, %vm291
    %vm303 = vmand %vm286, %vm291
    %vm304 = vmand %vm287, %vm291
    %vm305 = vmand %vm288, %vm291
    %vm306 = vmand %vm289, %vm291
    %vm307 = vmand %vm290, %vm291
    %v308 = vsel %vm292, 1, 0
    %v309 = vsel %vm293, 1, 0
    %v310 = vsel %vm294, 1, 0
    %v311 = vsel %vm295, 1, 0
    %v312 = vsel %vm296, 1, 0
    %v313 = vsel %vm297, 1, 0
    %v314 = vsel %vm298, 1, 0
    %v315 = vsel %vm299, 1, 0
    %v316 = vsel %vm300, 1, 0
    %v317 = vsel %vm301, 1, 0
    %v318 = vsel %vm302, 1, 0
    %v319 = vsel %vm303, 1, 0
    %v320 = vsel %vm304, 1, 0
    %v321 = vsel %vm305, 1, 0
    %v322 = vsel %vm306, 1, 0
    %v323 = vsel %vm307, 1, 0
    %v324 = vcvt.s32.f32 %v308
    %v325 = vcvt.s32.f32 %v309
    %v326 = vcvt.s32.f32 %v310
    %v327 = vcvt.s32.f32 %v311
    %v328 = vcvt.s32.f32 %v312
    %v329 = vcvt.s32.f32 %v313
    %v330 = vcvt.s32.f32 %v314
    %v331 = vcvt.s32.f32 %v315
    %v332 = vcvt.s32.f32 %v316
    %v333 = vcvt.s32.f32 %v317
    %v334 = vcvt.s32.f32 %v318
    %v335 = vcvt.s32.f32 %v319
    %v336 = vcvt.s32.f32 %v320
    %v337 = vcvt.s32.f32 %v321
    %v338 = vcvt.s32.f32 %v322
    %v339 = vcvt.s32.f32 %v323
    %340 = vmatpush.msra.mxu0 %v339
    %341 = vmatpush.msra.mxu0 %v338
    %342 = vmatpush.msra.mxu0 %v337
    %343 = vmatpush.msra.mxu0 %v336
    %344 = vmatpush.msra.mxu0 %v335
    %345 = vmatpush.msra.mxu0 %v334
    %346 = vmatpush.msra.mxu0 %v333
    %347 = vmatpush.msra.mxu0 %v332
    %348 = vmatpush.msra.mxu0 %v331
    %349 = vmatpush.msra.mxu0 %v330
    %350 = vmatpush.msra.mxu0 %v329
    %351 = vmatpush.msra.mxu0 %v328
    %352 = vmatpush.msra.mxu0 %v327
    %353 = vmatpush.msra.mxu0 %v326
    %354 = vmatpush.msra.mxu0 %v325
    %355 = vmatpush.msra.mxu0 %v324
    %356 = vmatmul.f32.gmra.mxu0 %v160
    %v357 = vpop.f32.mrf.mxu0
    %v358 = vadd.f32 0.0, %v357
    %359 = vdwg.mxu0
    %360 = vst [vmem:[#allocation5] sm:$0xff] %v358
    // Predicated region
    $region26: #{tpu_custom_call.1} parent=1 // pred_check
      _
    $region27: #{tpu_custom_call.1} parent=1 // pred_check_branch
      %362 = sbr.rel (0) target = $region29
    $region28: #{tpu_custom_call.1} parent=1 // pred_region
      %364 = vsyncadd [#allocation4], 0
      %s366 = sshll.u32 [#allocation5], 4
      %s367 = int_to_ptr.vmem [resolvable:$true] %s366
      %s368 = sshll.u32 %s5, 4
      %s369 = int_to_ptr.hbm [resolvable:$true] %s368
      %371 = dma.vmem_to_hbm [thread:$0]  %s367, 128, %s369, [#allocation4]
    $region29: #{tpu_custom_call.1} parent=1 // pred_fallthru
      _
    // Predicated region
    $region30: #{tpu_custom_call.1} parent=1 // pred_check
      _
    $region31: #{tpu_custom_call.1} parent=1 // pred_check_branch
      %373 = sbr.rel (0) target = $region33
    $region32: #{tpu_custom_call.1} parent=1 // pred_region
      %375 = dma.done [#allocation4], 128
    $region33: #{tpu_custom_call.1} parent=1 // pred_fallthru
      _
    %376 = vsyncpa [#allocation3], 1
    %377 = vsyncpa [#allocation4], 1

</llo_original>
